<compile_context>
chip_gen: v5e
topology: v5e:2x2
jax: 0.10.0
libtpu: 0.0.40
codegen_flags: <defaults>
</compile_context>

<pallas_src>
import math
from functools import partial

import jax
import jax.numpy as jnp
from jax.experimental import pallas as pl
from jax.experimental.pallas import tpu as pltpu


# ---------------------------------------------------------------------------
# Small helpers
# ---------------------------------------------------------------------------
def _cdiv(a, b):
    return -(-a // b)


def _round_up(a, b):
    return _cdiv(a, b) * b


def _sublane_multiple(dtype):
    bits = jnp.dtype(dtype).itemsize * 8
    if bits >= 32:
        return 8
    if bits == 16:
        return 16
    return 32  # int8 / fp8


def _tpu_params():
    """(vmem_budget_bytes, vmem_limit_bytes, num_tensorcores), generation-aware."""
    default_budget = 12 << 20
    phys = None
    try:
        info = pltpu.get_tpu_info()
        for name in ("vmem_capacity_bytes", "vmem_size_bytes", "vmem_bytes"):
            v = getattr(info, name, None)
            if v is None:
                continue
            try:
                v = int(v)
            except Exception:
                continue
            if v > 0:
                phys = v
                break
    except Exception:
        phys = None

    if phys:
        # 128-MiB-VMEM chips (v5e/v6e) -> ~28 MiB tile budget;
        # v7x (64 MiB per TC)          -> ~16 MiB tile budget.
        budget = int(min(max(phys // 4, default_budget), 28 << 20))
        limit = int(min(budget + (8 << 20), phys - (4 << 20)))
        limit = max(limit, budget)
    else:
        budget = default_budget
        limit = budget + (8 << 20)

    num_tc = 1
    try:
        kind = jax.devices()[0].device_kind.lower()
        if "7" in kind:            # v7x: 2 TensorCores per chip
            num_tc = 2
    except Exception:
        pass
    return budget, limit, num_tc


# ---------------------------------------------------------------------------
# Kernels
# ---------------------------------------------------------------------------
def _residual_fused_kernel(fn, x_ref, o_ref):
    """o = fn(x) + x, fn applied tile-locally (strictly elementwise fn only)."""
    xv = x_ref[...]
    o_ref[...] = (fn(xv) + xv).astype(o_ref.dtype)


def _residual_add_kernel(fx_ref, x_ref, o_ref):
    """o = fx + x  (fx = fn(x) precomputed outside for non-tile-local fn)."""
    o_ref[...] = (fx_ref[...] + x_ref[...]).astype(o_ref.dtype)


# ---------------------------------------------------------------------------
# View + tile planning
# ---------------------------------------------------------------------------
def _plan(shape, elem_bytes, sub, n_operands, budget, num_tc):
    """Pick a lane-dense 2-D view and tiling.

    Returns (view_shape, block_shape, grid, index_map) — grid is always 1-D.
    """
    total = max(int(math.prod(shape)), 1)
    # n_operands arrays x 2 double-buffers each must fit the VMEM budget.
    tile_budget = max(budget // (2 * n_operands), 64 << 10)

    if total % 128 == 0:
        # Lane-dense flatten: view (total // L, L), L = largest 128-multiple
        # divisor of total whose single sublane strip fits the tile budget.
        max_lane = max((tile_budget // (sub * elem_bytes)) // 128 * 128, 128)
        lane_cap = min(max_lane, total)
        if num_tc >= 2 and total >= 2 * 128 * sub:
            # keep at least 2 row blocks available for the 2 TensorCores
            lane_cap = min(lane_cap, max((total // 2) // 128 * 128, 128))
        k_max = max(lane_cap // 128, 1)
        L = 128
        for k in range(k_max, 0, -1):
            if total % (128 * k) == 0:
                L = 128 * k
                break
        M = total // L

        # Rows per tile: as many sublane multiples as fit the budget.
        max_rows = max(tile_budget // (L * elem_bytes), sub)
        block_rows = max((max_rows // sub) * sub, sub)
        if block_rows >= M:
            block_rows = M            # whole array in one block (full-dim, legal)

        # v7x: keep the parallel row grid >= 2 steps and even so both
        # TensorCores stay busy (pure HBM-bound streaming).  On single-TC
        # chips splitting a tile that already fits VMEM only adds overhead.
        if num_tc >= 2 and M > sub:
            br = min(_round_up(min(block_rows, M), sub), _round_up(M, sub))
            for _ in range(6):
                g = _cdiv(M, br)
                if g >= 2 and g % 2 == 0:
                    break
                new_br = max(((br // 2) // sub) * sub, sub)
                if new_br == br:
                    break
                br = new_br
            block_rows = br

        grid = (_cdiv(M, block_rows),)
        return (M, L), (block_rows, L), grid, (lambda i: (i, 0))

    # -------- total not a multiple of 128 (odd low-res UNet stages) --------
    if len(shape) >= 2:
        M, N = int(math.prod(shape[:-1])), int(shape[-1])
    else:
        M, N = 1, total

    padded_bytes = _round_up(M, sub) * _round_up(N, 128) * elem_bytes
    if padded_bytes <= tile_budget:
        # Tiny tensor: one full-dim block (always layout-legal).
        return (M, N), (M, N), (1,), (lambda i: (i, 0))

    # Large, 128-odd total: stream as a single row of lane-dense 128-wide
    # chunks (masked tail only on the last block).  A (1, C) tile pads its
    # sublanes 8x in VMEM, so account for that in the budget.
    c_max = max((tile_budget // (8 * elem_bytes)) // 128 * 128, 128)
    block_cols = min(c_max, _round_up(total, 128))
    if num_tc >= 2:
        for _ in range(6):
            g = _cdiv(total, block_cols)
            if g >= 2 and g % 2 == 0:
                break
            new_c = max((block_cols // 2) // 128 * 128, 128)
            if new_c == block_cols:
                break
            block_cols = new_c
    grid = (_cdiv(total, block_cols),)
    return (1, total), (1, block_cols), grid, (lambda j: (0, j))


# ---------------------------------------------------------------------------
# Wrapper
# ---------------------------------------------------------------------------
def residual(fn, x, *args, fuse_elementwise=False, donate_x=False, **kwargs):
    """Pallas implementation of Residual(fn)(x, *args, **kwargs) = fn(...) + x.

    fuse_elementwise=True requires fn to be strictly elementwise (tile-local);
    anything with cross-element reductions must use the non-fused path.
    """
    if x.ndim == 0:                        # scalar: nothing to tile
        return fn(x, *args, **kwargs) + x

    orig_shape = x.shape
    budget, vmem_limit, num_tc = _tpu_params()
    sub = _sublane_multiple(x.dtype)

    if fuse_elementwise:
        n_operands = 2
        # Headroom for f32 temporaries of fn on sub-32-bit inputs
        # (v5e has no bf16 VPU/EUP: the tile is widened to f32 in vregs).
        elem_bytes = max(jnp.dtype(x.dtype).itemsize, 4)
        out_dtype = x.dtype
        fx = None
    else:
        fx = fn(x, *args, **kwargs)
        out_dtype = jnp.result_type(fx.dtype, x.dtype)
        n_operands = 3
        elem_bytes = max(jnp.dtype(out_dtype).itemsize,
                         jnp.dtype(x.dtype).itemsize)

    view, block, grid, index_map = _plan(
        orig_shape, elem_bytes, sub, n_operands, budget, num_tc)

    spec = pl.BlockSpec(block, index_map)
    dims = ("parallel",) * len(grid)
    cparams = pltpu.CompilerParams(dimension_semantics=dims,
                                   vmem_limit_bytes=int(vmem_limit))
    out_shape = jax.ShapeDtypeStruct(view, out_dtype)
    x2 = x.reshape(view)

    if fuse_elementwise:
        fn_local = fn if (not args and not kwargs) else (
            lambda v: fn(v, *args, **kwargs))
        alias = {0: 0} if (donate_x and x2.dtype == out_dtype) else {}
        out2 = pl.pallas_call(
            partial(_residual_fused_kernel, fn_local),
            out_shape=out_shape,
            grid=grid,
            in_specs=[spec],
            out_specs=spec,
            input_output_aliases=alias,
            compiler_params=cparams,
        )(x2)
    else:
        # Arbitrary fn (e.g. conv/attention) is not tile-local -> compute it in
        # plain JAX, fuse only the residual add (in the promoted dtype).
        # TODO(synk): when XLA can fuse `+ x` into fn's own epilogue (e.g. as a
        # matmul epilogue), plain `fn(x) + x` avoids this kernel's extra HBM
        # pass; keep the Pallas add only where that fusion fails.
        fx2 = fx.reshape(view)
        alias = {0: 0} if fx2.dtype == out_dtype else {}
        out2 = pl.pallas_call(
            _residual_add_kernel,
            out_shape=out_shape,
            grid=grid,
            in_specs=[spec, spec],
            out_specs=spec,
            input_output_aliases=alias,   # write result over fx2's buffer
            compiler_params=cparams,
        )(fx2, x2)

    return out2.reshape(orig_shape)


# ---------------------------------------------------------------------------
# Demo / self-test
# ---------------------------------------------------------------------------
if __name__ == "__main__":
    key = jax.random.PRNGKey(0)
    k_x, k_w, k_odd = jax.random.split(key, 3)

    B, C, H, W = 2, 4, 16, 16
    x = jax.random.normal(k_x, (B, C, H, W), dtype=jnp.float32)

    # Case 1: element-wise fn (GELU) -- fused entirely inside the kernel.
    fn_elem = jax.nn.gelu
    run_fused = jax.jit(partial(residual, fn_elem, fuse_elementwise=True))
    out1 = jax.block_until_ready(run_fused(x))
    ref1 = fn_elem(x) + x

    # Case 2: arbitrary fn (deterministic 1x1 conv, channel-mixing) -- fn in
    # plain JAX, residual add (output aliased onto fn(x)) in the kernel.
    w_1x1 = jax.random.normal(k_w, (C, C), dtype=jnp.float32) * 0.1

    def fn_conv1x1(inp):
        return jnp.einsum("oc,bchw->bohw", w_1x1, inp)

    run_add = jax.jit(partial(residual, fn_conv1x1, fuse_elementwise=False))
    out2 = jax.block_until_ready(run_add(x))
    ref2 = fn_conv1x1(x) + x

    # Case 3: odd low-res shape (7x7, total not a multiple of 128) exercises
    # the lane-density fallback path.
    x_odd = jax.random.normal(k_odd, (2, 3, 7, 7), dtype=jnp.float32)
    run_odd = jax.jit(partial(residual, jnp.tanh, fuse_elementwise=True))
    out3 = jax.block_until_ready(run_odd(x_odd))
    ref3 = jnp.tanh(x_odd) + x_odd

    ok1 = bool(jnp.allclose(out1, ref1, atol=1e-5, rtol=1e-5))
    ok2 = bool(jnp.allclose(out2, ref2, atol=1e-5, rtol=1e-5))
    ok3 = bool(jnp.allclose(out3, ref3, atol=1e-5, rtol=1e-5))
    assert ok1, "fused element-wise residual mismatch"
    assert ok2, "residual-add kernel mismatch"
    assert ok3, "odd-shape fallback residual mismatch"
    print("KERNEL_OK")
</pallas_src>

<mosaic_0001>
module attributes {stable_mosaic.version = 11 : i64} {
  func.func @_residual_fused_kernel(%arg0: i32, %arg1: memref<1x2048xf32, #tpu.memory_space<vmem>>, %arg2: memref<1x2048xf32, #tpu.memory_space<vmem>>) attributes {dimension_semantics = [#tpu.dimension_semantics<parallel>], iteration_bounds = array<i64: 1>, scalar_prefetch = 0 : i64, scratch_operands = 0 : i64, tpu.core_type = #tpu.core_type<tc>, window_params = [{transform_indices = @transform_0, window_bounds = array<i64: 1, 2048>}, {transform_indices = @transform_1, window_bounds = array<i64: 1, 2048>}]} {
    %c0 = arith.constant 0 : index
    %c0_0 = arith.constant 0 : index
    %0 = vector.load %arg1[%c0, %c0_0] : memref<1x2048xf32, #tpu.memory_space<vmem>>, vector<1x2048xf32>
    %1 = arith.mulf %0, %0 : vector<1x2048xf32>
    %2 = arith.mulf %0, %1 : vector<1x2048xf32>
    %cst = arith.constant 4.471500e-02 : f32
    %3 = vector.broadcast %cst : f32 to vector<1x2048xf32>
    %4 = arith.mulf %3, %2 : vector<1x2048xf32>
    %5 = arith.addf %0, %4 : vector<1x2048xf32>
    %cst_1 = arith.constant 0.797884583 : f32
    %6 = vector.broadcast %cst_1 : f32 to vector<1x2048xf32>
    %7 = arith.mulf %6, %5 : vector<1x2048xf32>
    %8 = math.tanh %7 : vector<1x2048xf32>
    %cst_2 = arith.constant 1.000000e+00 : f32
    %9 = vector.broadcast %cst_2 : f32 to vector<1x2048xf32>
    %10 = arith.addf %9, %8 : vector<1x2048xf32>
    %cst_3 = arith.constant 5.000000e-01 : f32
    %11 = vector.broadcast %cst_3 : f32 to vector<1x2048xf32>
    %12 = arith.mulf %11, %10 : vector<1x2048xf32>
    %13 = arith.mulf %0, %12 : vector<1x2048xf32>
    %14 = arith.addf %13, %0 : vector<1x2048xf32>
    %c0_4 = arith.constant 0 : index
    %c0_5 = arith.constant 0 : index
    %15 = vector.load %arg2[%c0_4, %c0_5] : memref<1x2048xf32, #tpu.memory_space<vmem>>, vector<1x2048xf32>
    tpu.vector_store %arg2[%c0_4, %c0_5], %14 {strides = array<i32>} : memref<1x2048xf32, #tpu.memory_space<vmem>>, vector<1x2048xf32>,
    return
  }
  func.func @transform_0(%arg0: i32) -> (i32, i32) {
    %c0_i32 = arith.constant 0 : i32
    %c0_i32_0 = arith.constant 0 : i32
    return %arg0, %c0_i32 : i32, i32
  }
  func.func @transform_1(%arg0: i32) -> (i32, i32) {
    %c0_i32 = arith.constant 0 : i32
    %c0_i32_0 = arith.constant 0 : i32
    return %arg0, %c0_i32 : i32, i32
  }
}

</mosaic_0001>

<llo_original>
// kernel: residual.1
$region0: #{residual.1}
  #allocation0 [shape = 'u32[]', space=smem, size = 0x4, offset = 0x4, fixed_abs, tag = 'smem constant byte address 0x4 - core index']
  #allocation1 [shape = 'u32[72,128]{1,0:T(1,128)}', space=vmem, size = 0x9000, scoped, tag = 'internal scratch']
  %s0 = inlined_call_operand.vmem [shape: f32[1,2048], index: 0, kind: input, shape index: {}]
  %s1 = inlined_call_operand.vmem [shape: f32[1,2048], index: 1, kind: output, shape index: {}]
  %s2 = sld [smem:[#allocation0]]
  $region14: #{residual.1} parent=0
    _
  %s4 = ssub.s32 1, %s2
  %s5 = scalar_select 0, %s4, %s2
  // Predicated region
  $region2: #{residual.1} parent=0 // pred_check
    _
  $region3: #{residual.1} parent=0 // pred_check_branch
    %7 = sbr.rel (0) target = $region5
  $region4: #{residual.1} parent=0 // pred_region
    _
  $region5: #{residual.1} parent=0 // pred_fallthru
    _
  %v8 = vld [vmem:[%s0] sm:$0xff]
  %v9 = vld [vmem:[%s0 + $0x8] sm:$0xff]
  %v10 = vmul.f32 %v8, %v8
  %v11 = vmul.f32 %v9, %v9
  %v12 = vmul.f32 %v8, %v10
  %v13 = vmul.f32 %v9, %v11
  %v14 = vmul.f32 %v12, 0.044715
  %v15 = vmul.f32 %v13, 0.044715
  %v16 = vadd.f32 %v8, %v14
  %v17 = vadd.f32 %v9, %v15
  %v18 = vmul.f32 %v16, 0.7978846
  %v19 = vmul.f32 %v17, 0.7978846
  %v20 = vtanh.pop %v18
  %v21 = vtanh.pop %v19
  %v22 = vadd.f32 %v20, 1.0
  %v23 = vadd.f32 %v21, 1.0
  %v24 = vmul.f32 %v22, 0.5
  %v25 = vmul.f32 %v23, 0.5
  %v26 = vmul.f32 %v8, %v24
  %v27 = vmul.f32 %v9, %v25
  %v28 = vadd.f32 %v26, %v8
  %v29 = vadd.f32 %v27, %v9
  %30 = vst [vmem:[%s1] sm:$0xff] %v28
  %31 = vst [vmem:[%s1 + $0x8] sm:$0xff] %v29
  // Predicated region
  $region6: #{residual.1} parent=0 // pred_check
    _
  $region7: #{residual.1} parent=0 // pred_check_branch
    %33 = sbr.rel (0) target = $region9
  $region8: #{residual.1} parent=0 // pred_region
    _
  $region9: #{residual.1} parent=0 // pred_fallthru
    _
  // Predicated region
  $region10: #{residual.1} parent=0 // pred_check
    _
  $region11: #{residual.1} parent=0 // pred_check_branch
    %35 = sbr.rel (0) target = $region13
  $region12: #{residual.1} parent=0 // pred_region
    _
  $region13: #{residual.1} parent=0 // pred_fallthru
    _

</llo_original>
